<compile_context>
chip_gen: v5e
topology: v5e:2x2
jax: 0.10.0
libtpu: 0.0.40
codegen_flags: <defaults>
</compile_context>

<pallas_src>
import jax
import jax.numpy as jnp
from jax.experimental import pallas as pl
from jax.experimental.pallas import tpu as pltpu


# ~4 MiB doc block per grid step (double-buffered by Pallas -> ~8 MiB input
# VMEM), per the memory-bound tiling guidance.
DEFAULT_DOC_BLOCK_BYTES = 4 * 1024 * 1024


def _glorep_sum_kernel(doc_ref, out_ref, acc_ref):
    """out[b, :] = sum_q doc[b, q, :], accumulated in float32 over Q chunks."""
    q = pl.program_id(1)

    @pl.when(q == 0)
    def _init():
        acc_ref[...] = jnp.zeros_like(acc_ref)

    # Per-chunk partial sum over the query axis (f32 accumulation so bf16
    # inputs don't lose precision across many Q chunks).
    acc_ref[...] += jnp.sum(doc_ref[...].astype(jnp.float32), axis=1)

    @pl.when(q == pl.num_programs(1) - 1)
    def _finalize():
        out_ref[...] = acc_ref[...].astype(out_ref.dtype)


def _pick_query_tile(Q, D, itemsize, budget_bytes):
    """Largest Tq that divides Q, is a multiple of 8 (or == Q), and keeps an
    8-row doc chunk inside the byte budget."""
    if Q < 8 or Q * D * itemsize * 8 <= budget_bytes:
        return Q  # whole query axis fits in one chunk (or too short to block)
    best = None
    tq = 8
    while tq < Q:
        if Q % tq == 0 and 8 * tq * D * itemsize <= budget_bytes:
            best = tq
        tq += 8
    # Fallback: no multiple-of-8 divisor -> take the full axis (still correct;
    # only matters for unusual production Q values).
    return best if best is not None else Q


def _pick_batch_tile(B, Tq, D, itemsize, budget_bytes):
    """Largest Bt that is a multiple of 8 (or == B when B < 8), fits the byte
    budget, prefers to divide B (no ragged tail), and leaves >= 2 batch blocks
    when possible (two v7x TensorCores)."""
    if B < 8:
        return B
    budget_bt = max(8, (budget_bytes // (Tq * D * itemsize)) // 8 * 8)
    cap = min(B // 8 * 8, budget_bt)
    if cap >= B and B >= 16:
        cap = (B // 2) // 8 * 8  # split so both TensorCores get a block
    cap = max(8, cap)
    # Prefer a divisor of B -> no partial last block at all.
    for bt in range(cap, 7, -8):
        if B % bt == 0:
            return bt
    # Ragged tail: handled by Pallas' masked partial last block (safe, the
    # reduction is per batch row). No wrapper-side padding copy.
    return cap


def glorep_attention(doc_rep, w1=None, b1=None, w2=None, b2=None, u_w=None, *,
                     block_batch=None, block_query=None,
                     doc_block_bytes=DEFAULT_DOC_BLOCK_BYTES):
    """gloDoc = GloRepAttention(doc_rep); returns (B, 1, D).

    w1/b1/w2/b2/u_w are accepted for interface compatibility with the PyTorch
    module but are mathematically inert (softmax over a size-1 axis == 1), so
    they are deliberately NOT passed to the kernel (no DMAs, no compute).
    """
    del w1, b1, w2, b2, u_w  # inert w.r.t. the forward output (see header)

    B, Q, D = doc_rep.shape
    itemsize = jnp.dtype(doc_rep.dtype).itemsize

    Tq = int(block_query) if block_query is not None else _pick_query_tile(
        Q, D, itemsize, doc_block_bytes)
    Bt = int(block_batch) if block_batch is not None else _pick_batch_tile(
        B, Tq, D, itemsize, doc_block_bytes)

    nb = pl.cdiv(B, Bt)      # batch blocks (last one may be partial/masked)
    nq = pl.cdiv(Q, Tq)      # Tq divides Q by construction of the default

    # Explicit scoped-VMEM limit: enough for double-buffered doc tiles + the
    # output tile + the f32 accumulator, clamped to 48 MiB so it is safe on
    # v7x (64 MiB physical) as well as v5e/v6e.
    doc_block_b = Bt * Tq * D * itemsize
    out_block_b = Bt * D * itemsize
    acc_b = Bt * D * 4
    vmem_limit = int(min(48 << 20,
                         max(16 << 20,
                             3 * doc_block_b + 3 * out_block_b + acc_b + (2 << 20))))

    cost = pl.CostEstimate(
        flops=B * Q * D,                                   # the adds
        transcendentals=0,
        bytes_accessed=B * Q * D * itemsize + B * D * itemsize,
    )

    out2d = pl.pallas_call(
        _glorep_sum_kernel,
        out_shape=jax.ShapeDtypeStruct((B, D), doc_rep.dtype),
        grid_spec=pltpu.PrefetchScalarGridSpec(
            num_scalar_prefetch=0,
            grid=(nb, nq),                                  # reduction axis last
            in_specs=[
                pl.BlockSpec((Bt, Tq, D), lambda b, q: (b, q, 0)),
            ],
            # Output tile constant in q -> stays resident across the reduction.
            # At production sizes choose/pad D to a multiple of 128 for
            # lane-dense (unmasked) stores.
            out_specs=pl.BlockSpec((Bt, D), lambda b, q: (b, 0)),
            scratch_shapes=[pltpu.VMEM((Bt, D), jnp.float32)],
        ),
        compiler_params=pltpu.CompilerParams(
            dimension_semantics=("parallel", "arbitrary"),
            vmem_limit_bytes=vmem_limit,
        ),
        cost_estimate=cost,
    )(doc_rep)

    return out2d.reshape(B, 1, D)


def glorep_reference(doc_rep, w1, b1, w2, b2, u_w):
    """Pure-JAX reference mirroring the PyTorch forward op-for-op."""
    h = jnp.tanh(doc_rep @ w1 + b1)                 # (B, Q, H)
    u_t = h @ w2 + b2                               # (B, Q, D)
    logits = u_t @ u_w.T[None]                      # (B, Q, 1)
    weights = jax.nn.softmax(logits, axis=-1)       # (B, Q, 1) == 1
    return jnp.swapaxes(weights, 1, 2) @ doc_rep    # (B, 1, D)


if __name__ == "__main__":
    # Small shapes consistent with the module; batch chosen so the batch
    # tiling (Bt = 32 -> 2 parallel blocks) and the Q grid axis are exercised.
    batch_size = 64
    query_length = 8
    word_dim = 32
    hidden_size = 32

    key = jax.random.PRNGKey(0)
    k_doc, k_w1, k_b1, k_w2, k_b2, k_uw = jax.random.split(key, 6)

    doc_rep = jax.random.normal(
        k_doc, (batch_size, query_length, word_dim), dtype=jnp.float32)

    # torch Linear computes y = x @ W^T + b; weights are kept in (in, out)
    # orientation here. They feed only the (mathematically inert) MLP path and
    # are exercised by the pure-JAX reference below.
    w1 = jax.random.uniform(k_w1, (word_dim, hidden_size),
                            minval=-0.1, maxval=0.1, dtype=jnp.float32)
    b1 = jax.random.uniform(k_b1, (1, hidden_size),
                            minval=-0.1, maxval=0.1, dtype=jnp.float32)
    w2 = jax.random.uniform(k_w2, (hidden_size, word_dim),
                            minval=-0.1, maxval=0.1, dtype=jnp.float32)
    b2 = jax.random.uniform(k_b2, (1, word_dim),
                            minval=-0.1, maxval=0.1, dtype=jnp.float32)
    # u_w in torch is (1, 1, word_dim); stored here as (1, word_dim).
    u_w = jax.random.uniform(k_uw, (1, word_dim),
                             minval=-0.1, maxval=0.1, dtype=jnp.float32)

    out = glorep_attention(doc_rep, w1, b1, w2, b2, u_w)
    out = jax.block_until_ready(out)

    ref = glorep_reference(doc_rep, w1, b1, w2, b2, u_w)
    assert out.shape == (batch_size, 1, word_dim), out.shape
    assert jnp.allclose(out, ref, atol=1e-5, rtol=1e-5), "mismatch vs reference"

    print("KERNEL_OK")
</pallas_src>

<mosaic_0001>
module attributes {stable_mosaic.version = 11 : i64} {
  func.func @_glorep_sum_kernel(%arg0: i32, %arg1: i32, %arg2: memref<32x8x32xf32, #tpu.memory_space<vmem>>, %arg3: memref<32x32xf32, #tpu.memory_space<vmem>>, %arg4: memref<32x32xf32, #tpu.memory_space<vmem>>) attributes {dimension_semantics = [#tpu.dimension_semantics<parallel>, #tpu.dimension_semantics<arbitrary>], iteration_bounds = array<i64: 2, 1>, scalar_prefetch = 0 : i64, scratch_operands = 1 : i64, tpu.core_type = #tpu.core_type<tc>, window_params = [{transform_indices = @transform_0, window_bounds = array<i64: 32, 8, 32>}, {transform_indices = @transform_1, window_bounds = array<i64: 32, 32>}]} {
    %c0_i32 = arith.constant 0 : i32
    %0 = arith.cmpi eq, %arg1, %c0_i32 : i32
    %1 = arith.extui %0 : i1 to i32
    %c0_i32_0 = arith.constant 0 : i32
    %2 = arith.cmpi ne, %1, %c0_i32_0 : i32
    scf.if %2 {
      %cst_9 = arith.constant 0.000000e+00 : f32
      %11 = vector.broadcast %cst_9 : f32 to vector<32x32xf32>
      %c0_10 = arith.constant 0 : index
      %c0_11 = arith.constant 0 : index
      %12 = vector.load %arg4[%c0_10, %c0_11] : memref<32x32xf32, #tpu.memory_space<vmem>>, vector<32x32xf32>
      tpu.vector_store %arg4[%c0_10, %c0_11], %11 {strides = array<i32>} : memref<32x32xf32, #tpu.memory_space<vmem>>, vector<32x32xf32>,
    } else {
    }
    %c0 = arith.constant 0 : index
    %c0_1 = arith.constant 0 : index
    %3 = vector.load %arg4[%c0, %c0_1] : memref<32x32xf32, #tpu.memory_space<vmem>>, vector<32x32xf32>
    %c0_2 = arith.constant 0 : index
    %c0_3 = arith.constant 0 : index
    %c0_4 = arith.constant 0 : index
    %4 = vector.load %arg2[%c0_2, %c0_3, %c0_4] : memref<32x8x32xf32, #tpu.memory_space<vmem>>, vector<32x8x32xf32>
    %cst = arith.constant dense<0.000000e+00> : vector<32x32xf32>
    %5 = vector.multi_reduction <add>, %4, %cst [1] : vector<32x8x32xf32> to vector<32x32xf32>
    %6 = arith.addf %3, %5 : vector<32x32xf32>
    %c0_5 = arith.constant 0 : index
    %c0_6 = arith.constant 0 : index
    %7 = vector.load %arg4[%c0_5, %c0_6] : memref<32x32xf32, #tpu.memory_space<vmem>>, vector<32x32xf32>
    tpu.vector_store %arg4[%c0_5, %c0_6], %6 {strides = array<i32>} : memref<32x32xf32, #tpu.memory_space<vmem>>, vector<32x32xf32>,
    %c0_i32_7 = arith.constant 0 : i32
    %8 = arith.cmpi eq, %arg1, %c0_i32_7 : i32
    %9 = arith.extui %8 : i1 to i32
    %c0_i32_8 = arith.constant 0 : i32
    %10 = arith.cmpi ne, %9, %c0_i32_8 : i32
    scf.if %10 {
      %c0_9 = arith.constant 0 : index
      %c0_10 = arith.constant 0 : index
      %11 = vector.load %arg4[%c0_9, %c0_10] : memref<32x32xf32, #tpu.memory_space<vmem>>, vector<32x32xf32>
      %c0_11 = arith.constant 0 : index
      %c0_12 = arith.constant 0 : index
      %12 = vector.load %arg3[%c0_11, %c0_12] : memref<32x32xf32, #tpu.memory_space<vmem>>, vector<32x32xf32>
      tpu.vector_store %arg3[%c0_11, %c0_12], %11 {strides = array<i32>} : memref<32x32xf32, #tpu.memory_space<vmem>>, vector<32x32xf32>,
    } else {
    }
    return
  }
  func.func @transform_0(%arg0: i32, %arg1: i32) -> (i32, i32, i32) {
    %c0_i32 = arith.constant 0 : i32
    %c0_i32_0 = arith.constant 0 : i32
    return %arg0, %arg1, %c0_i32 : i32, i32, i32
  }
  func.func @transform_1(%arg0: i32, %arg1: i32) -> (i32, i32) {
    %c0_i32 = arith.constant 0 : i32
    %c0_i32_0 = arith.constant 0 : i32
    return %arg0, %c0_i32 : i32, i32
  }
}

</mosaic_0001>

<llo_original>
// kernel: tpu_custom_call.1
$region0: #{tpu_custom_call.1}
  #allocation0 [shape = 'u32[]', space=smem, size = 0x4, offset = 0x4, fixed_abs, tag = 'smem constant byte address 0x4 - core index']
  #allocation1 [shape = 'u32[72,128]{1,0:T(1,128)}', space=vmem, size = 0x9000, scoped, tag = 'internal scratch']
  #allocation2 [shape = 'f32[32,32]{1,0:T(8,128)}', space=vmem, size = 0x4000, scoped, tag = 'scratch operand']
  %s0 = inlined_call_operand.vmem [shape: f32[64,8,32], index: 0, kind: input, shape index: {}]
  %s1 = inlined_call_operand.vmem [shape: f32[64,32], index: 1, kind: output, shape index: {}]
  %s2 = sld [smem:[#allocation0]]
  $region45: #{tpu_custom_call.1} parent=0
    _
  %s4 = ssub.s32 1, %s2
  %s5 = scalar_select 0, %s4, %s2
  loop: start=0, step=1, limit=4
  $region2: #{tpu_custom_call.1} parent=0 // loop_pre_header
    _
  $region3: #{tpu_custom_call.1} parent=0 // loop_header
    %s7 = sphi 0, %s11
    %p8 = scmp.ge.s32.totalorder %s7, 4
    %s14 = sphi 0, %s26
    %s15 = sphi 0, %s22
    %s16 = sphi 0, %s14
    %s17 = sphi 0, %s15
    %s18 = sphi 0, %s16
    %s19 = sphi 0, %s17
    %s31 = sphi 0, %s33
    %s34 = sphi 0, %s31
    %s35 = sphi 0, %s34
    %s51 = sphi 0, %s35
    %s57 = sphi 0, %s59
    %s60 = sphi 0, %s57
    %s61 = sphi 0, %s60
    %s77 = sphi 0, %s61
  $region4: #{tpu_custom_call.1} parent=0 // loop_header_branch
    %10 = sbr.rel (%p8) target = $region8
  $region5: #{tpu_custom_call.1} parent=0 // loop_body
    %s12 = ssub.s32 %s7, 1
    %s13 = ssub.s32 %s7, 2
    %s20 = sadd.s32 1, %s15
    %p21 = scmp.ge.s32.totalorder %s20, 1
    %s22 = scalar_select %p21, 0, %s20
    %s23 = sadd.s32 1, %s14
    %s24 = scalar_select %p21, %s23, %s14
    %p25 = scmp.ge.s32.totalorder %s24, 2
    %s26 = scalar_select %p25, 0, %s24
    %s27 = ssub.s32 %s14, %s26
    %s28 = ssub.s32 %s15, %s22
    %s29 = sor.u32 %s27, %s28
    %p30 = scmp.eq.s32.totalorder %s29, 0
    %s32 = sadd.s32 %s31, 1
    %s33 = scalar_select %p30, %s31, %s32
    %p36 = pneg %p30
    %p37 = scmp.eq.s32.totalorder %s7, 1
    %p38 = por %p36, %p37
    %p39 = scmp.ne.s32.totalorder %s31, %s34
    %p40 = scmp.eq.s32.totalorder %s7, 0
    %p41 = por %p39, %p40
    %p42 = scmp.ne.s32.totalorder %s31, %s34
    %p43 = scmp.eq.s32.totalorder %s12, 1
    %p44 = por %p42, %p43
    %p45 = scmp.ne.s32.totalorder %s34, %s35
    %p46 = scmp.eq.s32.totalorder %s12, 0
    %p47 = por %p45, %p46
    %p48 = scmp.ne.s32.totalorder %s34, %s35
    %p49 = scmp.eq.s32.totalorder %s13, 1
    %p50 = por %p48, %p49
    %p52 = scmp.ne.s32.totalorder %s35, %s51
    %p53 = scmp.eq.s32.totalorder %s13, 0
    %p54 = por %p52, %p53
    %s55 = ssub.s32 %s14, %s26
    %p56 = scmp.eq.s32.totalorder %s55, 0
    %s58 = sadd.s32 %s57, 1
    %s59 = scalar_select %p56, %s57, %s58
    %p62 = pneg %p56
    %p63 = scmp.eq.s32.totalorder %s7, 1
    %p64 = por %p62, %p63
    %p65 = scmp.ne.s32.totalorder %s57, %s60
    %p66 = scmp.eq.s32.totalorder %s7, 0
    %p67 = por %p65, %p66
    %p68 = scmp.ne.s32.totalorder %s57, %s60
    %p69 = scmp.eq.s32.totalorder %s12, 1
    %p70 = por %p68, %p69
    %p71 = scmp.ne.s32.totalorder %s60, %s61
    %p72 = scmp.eq.s32.totalorder %s12, 0
    %p73 = por %p71, %p72
    %p74 = scmp.ne.s32.totalorder %s60, %s61
    %p75 = scmp.eq.s32.totalorder %s13, 1
    %p76 = por %p74, %p75
    %p78 = scmp.ne.s32.totalorder %s61, %s77
    %p79 = scmp.eq.s32.totalorder %s13, 0
    %p80 = por %p78, %p79
    %p81 = scmp.le.s32.totalorder 1, %s7
    %p82 = scmp.lt.s32.totalorder %s7, 3
    %p83 = pnand %p81, %p82
    %p84 = pneg %p83
    // Predicated region
    $region9: #{tpu_custom_call.1} parent=5 // pred_check
      _
    $region10: #{tpu_custom_call.1} parent=5 // pred_check_branch
      %86 = sbr.rel (%p83) target = $region12
    $region11: #{tpu_custom_call.1} parent=5 // pred_region
      %s87 = ssub.s32 %s7, 1
    $region12: #{tpu_custom_call.1} parent=5 // pred_fallthru
      _
    %p88 = scmp.lt.s32.totalorder %s7, 2
    // Predicated region
    $region13: #{tpu_custom_call.1} parent=5 // pred_check
      %p89 = pneg %p88
    $region14: #{tpu_custom_call.1} parent=5 // pred_check_branch
      %91 = sbr.rel (%p89) target = $region16
    $region15: #{tpu_custom_call.1} parent=5 // pred_region
      // Predicated region
      $region17: #{tpu_custom_call.1} parent=15 // pred_check
        %p92 = pneg %p41
      $region18: #{tpu_custom_call.1} parent=15 // pred_check_branch
        %94 = sbr.rel (%p92) target = $region20
      $region19: #{tpu_custom_call.1} parent=15 // pred_region
        %s95 = smul.u32 32, %s14
        %p96 = scmp.lt.s32.totalorder %s95, 63
        %s97 = scalar_select %p96, %s95, 63
        %p98 = scmp.lt.s32.totalorder %s15, 0
        %s99 = scalar_select %p98, %s15, 0
        %s100 = sadd.s32 %s99, %s97
        %s101 = smul.addr %s100, 8
        %s102 = scalar_lea.vmem %s0, %s101
        %s103 = smul.u32 32, %s14
      $region20: #{tpu_custom_call.1} parent=15 // pred_fallthru
        _
    $region16: #{tpu_custom_call.1} parent=5 // pred_fallthru
      _
    %p104 = scmp.le.s32.totalorder 1, %s7
    %p105 = scmp.lt.s32.totalorder %s7, 3
    %p106 = pnand %p104, %p105
    %p107 = pneg %p106
    // Predicated region
    $region21: #{tpu_custom_call.1} parent=5 // pred_check
      _
    $region22: #{tpu_custom_call.1} parent=5 // pred_check_branch
      %109 = sbr.rel (%p106) target = $region24
    $region23: #{tpu_custom_call.1} parent=5 // pred_region
      %s110 = ssub.s32 %s7, 1
      %s111 = smul.u32 32, %s16
      %p112 = scmp.lt.s32.totalorder %s111, 63
      %s113 = scalar_select %p112, %s111, 63
      %p114 = scmp.lt.s32.totalorder %s17, 0
      %s115 = scalar_select %p114, %s17, 0
      %s116 = sadd.s32 %s115, %s113
      %s117 = smul.addr %s116, 8
      %s118 = scalar_lea.vmem %s0, %s117
      %p119 = pneg %p47
      %p120 = pneg %p44
      %p121 = pneg %p73
      %p122 = pneg %p70
      %s123 = smul.u32 4, %s16
      %p124 = scmp.lt.s32.totalorder %s123, 7
      %s125 = scalar_select %p124, %s123, 7
      %s126 = smul.addr %s125, 8
      %s127 = scalar_lea.vmem %s1, %s126
      %s128 = smul.u32 32, %s16
      %p129 = scmp.lt.s32.totalorder %s128, 63
      %s130 = scalar_select %p129, %s128, 63
      %p131 = scmp.lt.s32.totalorder %s17, 0
      %s132 = scalar_select %p131, %s17, 0
      %s133 = sadd.s32 %s132, %s130
      %s134 = smul.addr %s133, 8
      %s135 = scalar_lea.vmem %s0, %s134
      %s136 = smul.u32 32, %s16
      %s137 = smul.u32 4, %s16
      %p138 = scmp.lt.s32.totalorder %s137, 7
      %s139 = scalar_select %p138, %s137, 7
      %s140 = smul.addr %s139, 8
      %s141 = scalar_lea.vmem %s1, %s140
      %s142 = smul.u32 4, %s16
      %p143 = scmp.eq.s32.totalorder %s17, 0
      // Predicated region
      $region25: #{tpu_custom_call.1} parent=23 // pred_check
        %p144 = pneg %p143
      $region26: #{tpu_custom_call.1} parent=23 // pred_check_branch
        %146 = sbr.rel (%p144) target = $region28
      $region27: #{tpu_custom_call.1} parent=23 // pred_region
        %vm147 = vcmask 261120
        %148 = vst.msk [vmem:[#allocation2] sm:$0xff] %vm147, 0.0
        %149 = vst.msk [vmem:[#allocation2 + $0x8] sm:$0xff] %vm147, 0.0
        %150 = vst.msk [vmem:[#allocation2 + $0x10] sm:$0xff] %vm147, 0.0
        %151 = vst.msk [vmem:[#allocation2 + $0x18] sm:$0xff] %vm147, 0.0
      $region28: #{tpu_custom_call.1} parent=23 // pred_fallthru
        _
      %v152 = vld [vmem:[#allocation2] sm:$0xff]
      %v153 = vld [vmem:[#allocation2 + $0x8] sm:$0xff]
      %v154 = vld [vmem:[#allocation2 + $0x10] sm:$0xff]
      %v155 = vld [vmem:[#allocation2 + $0x18] sm:$0xff]
      %v156 = vld [vmem:[%s135] sm:$0xff]
      %v157 = vld [vmem:[%s135 + $0x8] sm:$0xff]
      %v158 = vld [vmem:[%s135 + $0x10] sm:$0xff]
      %v159 = vld [vmem:[%s135 + $0x18] sm:$0xff]
      %v160 = vld [vmem:[%s135 + $0x20] sm:$0xff]
      %v161 = vld [vmem:[%s135 + $0x28] sm:$0xff]
      %v162 = vld [vmem:[%s135 + $0x30] sm:$0xff]
      %v163 = vld [vmem:[%s135 + $0x38] sm:$0xff]
      %v164 = vld [vmem:[%s135 + $0x40] sm:$0xff]
      %v165 = vld [vmem:[%s135 + $0x48] sm:$0xff]
      %v166 = vld [vmem:[%s135 + $0x50] sm:$0xff]
      %v167 = vld [vmem:[%s135 + $0x58] sm:$0xff]
      %v168 = vld [vmem:[%s135 + $0x60] sm:$0xff]
      %v169 = vld [vmem:[%s135 + $0x68] sm:$0xff]
      %v170 = vld [vmem:[%s135 + $0x70] sm:$0xff]
      %v171 = vld [vmem:[%s135 + $0x78] sm:$0xff]
      %v172 = vld [vmem:[%s135 + $0x80] sm:$0xff]
      %v173 = vld [vmem:[%s135 + $0x88] sm:$0xff]
      %v174 = vld [vmem:[%s135 + $0x90] sm:$0xff]
      %v175 = vld [vmem:[%s135 + $0x98] sm:$0xff]
      %v176 = vld [vmem:[%s135 + $0xa0] sm:$0xff]
      %v177 = vld [vmem:[%s135 + $0xa8] sm:$0xff]
      %v178 = vld [vmem:[%s135 + $0xb0] sm:$0xff]
      %v179 = vld [vmem:[%s135 + $0xb8] sm:$0xff]
      %v180 = vld [vmem:[%s135 + $0xc0] sm:$0xff]
      %v181 = vld [vmem:[%s135 + $0xc8] sm:$0xff]
      %v182 = vld [vmem:[%s135 + $0xd0] sm:$0xff]
      %v183 = vld [vmem:[%s135 + $0xd8] sm:$0xff]
      %v184 = vld [vmem:[%s135 + $0xe0] sm:$0xff]
      %v185 = vld [vmem:[%s135 + $0xe8] sm:$0xff]
      %v186 = vld [vmem:[%s135 + $0xf0] sm:$0xff]
      %v187 = vld [vmem:[%s135 + $0xf8] sm:$0xff]
      %vm188 = vcmask 261120
      %v189 = vsel %vm188, %v156, 0.0
      %v190 = vrot.slane %v189, 4
      %v191 = vadd.f32 %v189, %v190
      %v192 = vrot.slane %v191, 2
      %v193 = vadd.f32 %v191, %v192
      %v194 = vrot.slane %v193, 1
      %v195 = vadd.f32 %v193, %v194
      %v196 = vsel %vm188, %v157, 0.0
      %v197 = vrot.slane %v196, 4
      %v198 = vadd.f32 %v196, %v197
      %v199 = vrot.slane %v198, 2
      %v200 = vadd.f32 %v198, %v199
      %v201 = vrot.slane %v200, 1
      %v202 = vadd.f32 %v200, %v201
      %v203 = vsel %vm188, %v158, 0.0
      %v204 = vrot.slane %v203, 4
      %v205 = vadd.f32 %v203, %v204
      %v206 = vrot.slane %v205, 2
      %v207 = vadd.f32 %v205, %v206
      %v208 = vrot.slane %v207, 1
      %v209 = vadd.f32 %v207, %v208
      %v210 = vsel %vm188, %v159, 0.0
      %v211 = vrot.slane %v210, 4
      %v212 = vadd.f32 %v210, %v211
      %v213 = vrot.slane %v212, 2
      %v214 = vadd.f32 %v212, %v213
      %v215 = vrot.slane %v214, 1
      %v216 = vadd.f32 %v214, %v215
      %v217 = vsel %vm188, %v160, 0.0
      %v218 = vrot.slane %v217, 4
      %v219 = vadd.f32 %v217, %v218
      %v220 = vrot.slane %v219, 2
      %v221 = vadd.f32 %v219, %v220
      %v222 = vrot.slane %v221, 1
      %v223 = vadd.f32 %v221, %v222
      %v224 = vsel %vm188, %v161, 0.0
      %v225 = vrot.slane %v224, 4
      %v226 = vadd.f32 %v224, %v225
      %v227 = vrot.slane %v226, 2
      %v228 = vadd.f32 %v226, %v227
      %v229 = vrot.slane %v228, 1
      %v230 = vadd.f32 %v228, %v229
      %v231 = vsel %vm188, %v162, 0.0
      %v232 = vrot.slane %v231, 4
      %v233 = vadd.f32 %v231, %v232
      %v234 = vrot.slane %v233, 2
      %v235 = vadd.f32 %v233, %v234
      %v236 = vrot.slane %v235, 1
      %v237 = vadd.f32 %v235, %v236
      %v238 = vsel %vm188, %v163, 0.0
      %v239 = vrot.slane %v238, 4
      %v240 = vadd.f32 %v238, %v239
      %v241 = vrot.slane %v240, 2
      %v242 = vadd.f32 %v240, %v241
      %v243 = vrot.slane %v242, 1
      %v244 = vadd.f32 %v242, %v243
      %v245 = vsel %vm188, %v164, 0.0
      %v246 = vrot.slane %v245, 4
      %v247 = vadd.f32 %v245, %v246
      %v248 = vrot.slane %v247, 2
      %v249 = vadd.f32 %v247, %v248
      %v250 = vrot.slane %v249, 1
      %v251 = vadd.f32 %v249, %v250
      %v252 = vsel %vm188, %v165, 0.0
      %v253 = vrot.slane %v252, 4
      %v254 = vadd.f32 %v252, %v253
      %v255 = vrot.slane %v254, 2
      %v256 = vadd.f32 %v254, %v255
      %v257 = vrot.slane %v256, 1
      %v258 = vadd.f32 %v256, %v257
      %v259 = vsel %vm188, %v166, 0.0
      %v260 = vrot.slane %v259, 4
      %v261 = vadd.f32 %v259, %v260
      %v262 = vrot.slane %v261, 2
      %v263 = vadd.f32 %v261, %v262
      %v264 = vrot.slane %v263, 1
      %v265 = vadd.f32 %v263, %v264
      %v266 = vsel %vm188, %v167, 0.0
      %v267 = vrot.slane %v266, 4
      %v268 = vadd.f32 %v266, %v267
      %v269 = vrot.slane %v268, 2
      %v270 = vadd.f32 %v268, %v269
      %v271 = vrot.slane %v270, 1
      %v272 = vadd.f32 %v270, %v271
      %v273 = vsel %vm188, %v168, 0.0
      %v274 = vrot.slane %v273, 4
      %v275 = vadd.f32 %v273, %v274
      %v276 = vrot.slane %v275, 2
      %v277 = vadd.f32 %v275, %v276
      %v278 = vrot.slane %v277, 1
      %v279 = vadd.f32 %v277, %v278
      %v280 = vsel %vm188, %v169, 0.0
      %v281 = vrot.slane %v280, 4
      %v282 = vadd.f32 %v280, %v281
      %v283 = vrot.slane %v282, 2
      %v284 = vadd.f32 %v282, %v283
      %v285 = vrot.slane %v284, 1
      %v286 = vadd.f32 %v284, %v285
      %v287 = vsel %vm188, %v170, 0.0
      %v288 = vrot.slane %v287, 4
      %v289 = vadd.f32 %v287, %v288
      %v290 = vrot.slane %v289, 2
      %v291 = vadd.f32 %v289, %v290
      %v292 = vrot.slane %v291, 1
      %v293 = vadd.f32 %v291, %v292
      %v294 = vsel %vm188, %v171, 0.0
      %v295 = vrot.slane %v294, 4
      %v296 = vadd.f32 %v294, %v295
      %v297 = vrot.slane %v296, 2
      %v298 = vadd.f32 %v296, %v297
      %v299 = vrot.slane %v298, 1
      %v300 = vadd.f32 %v298, %v299
      %v301 = vsel %vm188, %v172, 0.0
      %v302 = vrot.slane %v301, 4
      %v303 = vadd.f32 %v301, %v302
      %v304 = vrot.slane %v303, 2
      %v305 = vadd.f32 %v303, %v304
      %v306 = vrot.slane %v305, 1
      %v307 = vadd.f32 %v305, %v306
      %v308 = vsel %vm188, %v173, 0.0
      %v309 = vrot.slane %v308, 4
      %v310 = vadd.f32 %v308, %v309
      %v311 = vrot.slane %v310, 2
      %v312 = vadd.f32 %v310, %v311
      %v313 = vrot.slane %v312, 1
      %v314 = vadd.f32 %v312, %v313
      %v315 = vsel %vm188, %v174, 0.0
      %v316 = vrot.slane %v315, 4
      %v317 = vadd.f32 %v315, %v316
      %v318 = vrot.slane %v317, 2
      %v319 = vadd.f32 %v317, %v318
      %v320 = vrot.slane %v319, 1
      %v321 = vadd.f32 %v319, %v320
      %v322 = vsel %vm188, %v175, 0.0
      %v323 = vrot.slane %v322, 4
      %v324 = vadd.f32 %v322, %v323
      %v325 = vrot.slane %v324, 2
      %v326 = vadd.f32 %v324, %v325
      %v327 = vrot.slane %v326, 1
      %v328 = vadd.f32 %v326, %v327
      %v329 = vsel %vm188, %v176, 0.0
      %v330 = vrot.slane %v329, 4
      %v331 = vadd.f32 %v329, %v330
      %v332 = vrot.slane %v331, 2
      %v333 = vadd.f32 %v331, %v332
      %v334 = vrot.slane %v333, 1
      %v335 = vadd.f32 %v333, %v334
      %v336 = vsel %vm188, %v177, 0.0
      %v337 = vrot.slane %v336, 4
      %v338 = vadd.f32 %v336, %v337
      %v339 = vrot.slane %v338, 2
      %v340 = vadd.f32 %v338, %v339
      %v341 = vrot.slane %v340, 1
      %v342 = vadd.f32 %v340, %v341
      %v343 = vsel %vm188, %v178, 0.0
      %v344 = vrot.slane %v343, 4
      %v345 = vadd.f32 %v343, %v344
      %v346 = vrot.slane %v345, 2
      %v347 = vadd.f32 %v345, %v346
      %v348 = vrot.slane %v347, 1
      %v349 = vadd.f32 %v347, %v348
      %v350 = vsel %vm188, %v179, 0.0
      %v351 = vrot.slane %v350, 4
      %v352 = vadd.f32 %v350, %v351
      %v353 = vrot.slane %v352, 2
      %v354 = vadd.f32 %v352, %v353
      %v355 = vrot.slane %v354, 1
      %v356 = vadd.f32 %v354, %v355
      %v357 = vsel %vm188, %v180, 0.0
      %v358 = vrot.slane %v357, 4
      %v359 = vadd.f32 %v357, %v358
      %v360 = vrot.slane %v359, 2
      %v361 = vadd.f32 %v359, %v360
      %v362 = vrot.slane %v361, 1
      %v363 = vadd.f32 %v361, %v362
      %v364 = vsel %vm188, %v181, 0.0
      %v365 = vrot.slane %v364, 4
      %v366 = vadd.f32 %v364, %v365
      %v367 = vrot.slane %v366, 2
      %v368 = vadd.f32 %v366, %v367
      %v369 = vrot.slane %v368, 1
      %v370 = vadd.f32 %v368, %v369
      %v371 = vsel %vm188, %v182, 0.0
      %v372 = vrot.slane %v371, 4
      %v373 = vadd.f32 %v371, %v372
      %v374 = vrot.slane %v373, 2
      %v375 = vadd.f32 %v373, %v374
      %v376 = vrot.slane %v375, 1
      %v377 = vadd.f32 %v375, %v376
      %v378 = vsel %vm188, %v183, 0.0
      %v379 = vrot.slane %v378, 4
      %v380 = vadd.f32 %v378, %v379
      %v381 = vrot.slane %v380, 2
      %v382 = vadd.f32 %v380, %v381
      %v383 = vrot.slane %v382, 1
      %v384 = vadd.f32 %v382, %v383
      %v385 = vsel %vm188, %v184, 0.0
      %v386 = vrot.slane %v385, 4
      %v387 = vadd.f32 %v385, %v386
      %v388 = vrot.slane %v387, 2
      %v389 = vadd.f32 %v387, %v388
      %v390 = vrot.slane %v389, 1
      %v391 = vadd.f32 %v389, %v390
      %v392 = vsel %vm188, %v185, 0.0
      %v393 = vrot.slane %v392, 4
      %v394 = vadd.f32 %v392, %v393
      %v395 = vrot.slane %v394, 2
      %v396 = vadd.f32 %v394, %v395
      %v397 = vrot.slane %v396, 1
      %v398 = vadd.f32 %v396, %v397
      %v399 = vsel %vm188, %v186, 0.0
      %v400 = vrot.slane %v399, 4
      %v401 = vadd.f32 %v399, %v400
      %v402 = vrot.slane %v401, 2
      %v403 = vadd.f32 %v401, %v402
      %v404 = vrot.slane %v403, 1
      %v405 = vadd.f32 %v403, %v404
      %v406 = vsel %vm188, %v187, 0.0
      %v407 = vrot.slane %v406, 4
      %v408 = vadd.f32 %v406, %v407
      %v409 = vrot.slane %v408, 2
      %v410 = vadd.f32 %v408, %v409
      %v411 = vrot.slane %v410, 1
      %v412 = vadd.f32 %v410, %v411
      %vm445 = vcmask 1041409
      %v446 = vsel %vm445, %v202, %v195
      %vm447 = vcmask 1042434
      %v448 = vsel %vm447, %v209, %v446
      %vm449 = vcmask 1043459
      %v450 = vsel %vm449, %v216, %v448
      %vm451 = vcmask 1044484
      %v452 = vsel %vm451, %v223, %v450
      %vm453 = vcmask 1045509
      %v454 = vsel %vm453, %v230, %v452
      %vm455 = vcmask 1046534
      %v456 = vsel %vm455, %v237, %v454
      %vm457 = vcmask 1047559
      %v458 = vsel %vm457, %v244, %v456
      %v459 = vsel %vm445, %v258, %v251
      %v460 = vsel %vm447, %v265, %v459
      %v461 = vsel %vm449, %v272, %v460
      %v462 = vsel %vm451, %v279, %v461
      %v463 = vsel %vm453, %v286, %v462
      %v464 = vsel %vm455, %v293, %v463
      %v465 = vsel %vm457, %v300, %v464
      %v466 = vsel %vm445, %v314, %v307
      %v467 = vsel %vm447, %v321, %v466
      %v468 = vsel %vm449, %v328, %v467
      %v469 = vsel %vm451, %v335, %v468
      %v470 = vsel %vm453, %v342, %v469
      %v471 = vsel %vm455, %v349, %v470
      %v472 = vsel %vm457, %v356, %v471
      %v473 = vsel %vm445, %v370, %v363
      %v474 = vsel %vm447, %v377, %v473
      %v475 = vsel %vm449, %v384, %v474
      %v476 = vsel %vm451, %v391, %v475
      %v477 = vsel %vm453, %v398, %v476
      %v478 = vsel %vm455, %v405, %v477
      %v479 = vsel %vm457, %v412, %v478
      %v484 = vadd.f32 %v152, %v458
      %v485 = vadd.f32 %v153, %v465
      %v486 = vadd.f32 %v154, %v472
      %v487 = vadd.f32 %v155, %v479
      %488 = vst.msk [vmem:[#allocation2] sm:$0xff] %vm188, %v484
      %489 = vst.msk [vmem:[#allocation2 + $0x8] sm:$0xff] %vm188, %v485
      %490 = vst.msk [vmem:[#allocation2 + $0x10] sm:$0xff] %vm188, %v486
      %491 = vst.msk [vmem:[#allocation2 + $0x18] sm:$0xff] %vm188, %v487
      // Predicated region
      $region29: #{tpu_custom_call.1} parent=23 // pred_check
        %p492 = pneg %p143
      $region30: #{tpu_custom_call.1} parent=23 // pred_check_branch
        %494 = sbr.rel (%p492) target = $region32
      $region31: #{tpu_custom_call.1} parent=23 // pred_region
        %v495 = vld [vmem:[#allocation2] sm:$0xff]
        %v496 = vld [vmem:[#allocation2 + $0x8] sm:$0xff]
        %v497 = vld [vmem:[#allocation2 + $0x10] sm:$0xff]
        %v498 = vld [vmem:[#allocation2 + $0x18] sm:$0xff]
        %499 = vst.msk [vmem:[%s141] sm:$0xff] %vm188, %v495
        %500 = vst.msk [vmem:[%s141 + $0x8] sm:$0xff] %vm188, %v496
        %501 = vst.msk [vmem:[%s141 + $0x10] sm:$0xff] %vm188, %v497
        %502 = vst.msk [vmem:[%s141 + $0x18] sm:$0xff] %vm188, %v498
      $region32: #{tpu_custom_call.1} parent=23 // pred_fallthru
        _
      %s503 = smul.u32 4, %s16
      %p504 = scmp.lt.s32.totalorder %s503, 7
      %s505 = scalar_select %p504, %s503, 7
      %s506 = smul.addr %s505, 8
      %s507 = scalar_lea.vmem %s1, %s506
      // Predicated region
      $region33: #{tpu_custom_call.1} parent=23 // pred_check
        %p508 = pneg %p70
      $region34: #{tpu_custom_call.1} parent=23 // pred_check_branch
        %510 = sbr.rel (%p508) target = $region36
      $region35: #{tpu_custom_call.1} parent=23 // pred_region
        %s511 = smul.u32 4, %s16
      $region36: #{tpu_custom_call.1} parent=23 // pred_fallthru
        _
    $region24: #{tpu_custom_call.1} parent=5 // pred_fallthru
      _
    %p512 = scmp.le.s32.totalorder 2, %s7
    // Predicated region
    $region37: #{tpu_custom_call.1} parent=5 // pred_check
      %p513 = pneg %p512
    $region38: #{tpu_custom_call.1} parent=5 // pred_check_branch
      %515 = sbr.rel (%p513) target = $region40
    $region39: #{tpu_custom_call.1} parent=5 // pred_region
      %s516 = ssub.s32 %s7, 2
      // Predicated region
      $region41: #{tpu_custom_call.1} parent=39 // pred_check
        %p517 = pneg %p76
      $region42: #{tpu_custom_call.1} parent=39 // pred_check_branch
        %519 = sbr.rel (%p517) target = $region44
      $region43: #{tpu_custom_call.1} parent=39 // pred_region
        %s520 = smul.u32 4, %s18
        %p521 = scmp.lt.s32.totalorder %s520, 7
        %s522 = scalar_select %p521, %s520, 7
        %s523 = smul.addr %s522, 8
        %s524 = scalar_lea.vmem %s1, %s523
      $region44: #{tpu_custom_call.1} parent=39 // pred_fallthru
        _
    $region40: #{tpu_custom_call.1} parent=5 // pred_fallthru
      _
  $region6: #{tpu_custom_call.1} parent=0 // loop_footer
    %s11 = sadd.s32 1, %s7
  $region7: #{tpu_custom_call.1} parent=0 // loop_footer_branch
    %6 = sbr.rel target = $region3
  $region8: #{tpu_custom_call.1} parent=0 // loop_exit
    _

</llo_original>
